<compile_context>
chip_gen: v6e
topology: v6e:2x2x1
jax: 0.10.0
libtpu: 0.0.40
codegen_flags: <defaults>
</compile_context>

<pallas_src>
import functools

import jax
import jax.numpy as jnp
import numpy as np
from jax.experimental import pallas as pl
from jax.experimental.pallas import tpu as pltpu


def _mix32(z):
    """splitmix/lowbias32-style finalizer on uint32 values."""
    z = z ^ (z >> 16)
    z = z * jnp.uint32(0x7FEB352D)
    z = z ^ (z >> 15)
    z = z * jnp.uint32(0x846CA68B)
    z = z ^ (z >> 16)
    return z


def _vdrop_kernel(seed_ref, x_ref, o_ref, *, keep_threshold, inv_keep_prob):
    # Grid = (batch row, T tile).  The mask depends only on (seed, batch row),
    # NOT on program_id(1), so every T tile of a row sees the same mask.
    H = x_ref.shape[-1]
    row = pl.program_id(0).astype(jnp.uint32)
    seed = seed_ref[0].astype(jnp.uint32)

    lane = jax.lax.broadcasted_iota(jnp.int32, (1, H), 1).astype(jnp.uint32)
    z = lane * jnp.uint32(0x9E3779B1)
    z = z + seed * jnp.uint32(0x85EBCA77)
    z = z + row * jnp.uint32(0xC2B2AE3D)
    z = _mix32(_mix32(z))

    # 24-bit uniform compared against an integer threshold: keep iff u24 < thr.
    u24 = (z >> 8).astype(jnp.int32)                       # values in [0, 2^24)
    keep = u24 < jnp.int32(keep_threshold)                 # (1, H) bool

    # Fold the 1/keep_prob scale into the (1, H) mask, stay in the input dtype.
    mask_scaled = jnp.where(
        keep, jnp.float32(inv_keep_prob), jnp.float32(0.0)
    ).astype(x_ref.dtype)

    o_ref[0] = x_ref[0] * mask_scaled                      # (tile_T, H) * (1, H)


def _pick_tile_t(T, H, itemsize, block_bytes):
    """Largest multiple-of-8 divisor of T with block <= block_bytes (else full T)."""
    if T <= 8:
        return T
    cand = max(8, min(T, (block_bytes // max(1, H * itemsize)) // 8 * 8))
    t = (cand // 8) * 8
    while t >= 8:
        if T % t == 0:
            return t
        t -= 8
    return T  # T has no multiple-of-8 divisor <= cand: use the full axis.


def variational_dropout(x, *, dropout, seed, training=True, batch_first=True,
                        block_bytes=2 * 1024 * 1024):
    """Pallas implementation of VariationalDropout.forward for (B, T, H) inputs."""
    if (not training) or dropout <= 0.0:
        return x
    if not batch_first:
        # TODO(synk): reference batch_first=False branch builds the mask from x.size(0)
        # (only broadcast-valid when dim0 == dim1); only batch_first=True is implemented.
        raise NotImplementedError("batch_first=False is not implemented")

    B, T, H = x.shape
    keep_prob = 1.0 - float(dropout)
    keep_threshold = min(int(round(keep_prob * (1 << 24))), 1 << 24)
    inv_keep_prob = 1.0 / keep_prob

    tile_t = _pick_tile_t(T, H, x.dtype.itemsize, block_bytes)
    n_t = T // tile_t

    seed_arr = jnp.asarray([seed], dtype=jnp.int32)
    kernel = functools.partial(
        _vdrop_kernel, keep_threshold=keep_threshold, inv_keep_prob=inv_keep_prob
    )

    return pl.pallas_call(
        kernel,
        out_shape=jax.ShapeDtypeStruct((B, T, H), x.dtype),
        grid_spec=pltpu.PrefetchScalarGridSpec(
            num_scalar_prefetch=1,                       # seed lands in SMEM
            grid=(B, n_t),
            in_specs=[pl.BlockSpec((1, tile_t, H), lambda b, t, seed: (b, t, 0))],
            out_specs=pl.BlockSpec((1, tile_t, H), lambda b, t, seed: (b, t, 0)),
        ),
        compiler_params=pltpu.CompilerParams(
            # Mask is a pure function of (seed, batch row): every grid step is
            # order-independent, so both axes can shard across cores (v7x).
            dimension_semantics=("parallel", "parallel"),
        ),
    )(seed_arr, x)


def _check(x_np, out_np, keep_prob):
    scaled = x_np * np.float32(1.0 / keep_prob)
    is_zero = out_np == 0.0
    is_kept = np.isclose(out_np, scaled, rtol=1e-5, atol=1e-6)
    assert np.all(is_zero | is_kept), "output must be 0 or x/(1-p) elementwise"
    mask = ~is_zero
    assert np.all(mask == mask[:, :1, :]), "mask must be shared across the temporal axis"


if __name__ == "__main__":
    p = 0.3
    keep_prob = 1.0 - p

    # Case 1: small shape, one full-T block per batch row.
    B, T, H = 4, 8, 128
    x = jax.random.normal(jax.random.PRNGKey(0), (B, T, H), dtype=jnp.float32)
    out = jax.block_until_ready(
        variational_dropout(x, dropout=p, seed=1234, training=True, batch_first=True)
    )
    _check(np.asarray(x), np.asarray(out), keep_prob)

    # Case 2: exercise the T-tiling path (tile_T=16 -> 2 tiles per row); the
    # mask must stay identical across tiles of the same row.
    B2, T2, H2 = 2, 32, 128
    x2 = jax.random.normal(jax.random.PRNGKey(1), (B2, T2, H2), dtype=jnp.float32)
    out2 = jax.block_until_ready(
        variational_dropout(x2, dropout=p, seed=7, training=True, batch_first=True,
                            block_bytes=16 * 128 * 4)
    )
    _check(np.asarray(x2), np.asarray(out2), keep_prob)

    # Eval-mode path is identity.
    out_eval = variational_dropout(x, dropout=p, seed=1234, training=False)
    assert np.allclose(np.asarray(out_eval), np.asarray(x))

    print("KERNEL_OK")
</pallas_src>

<mosaic_0001>
module attributes {stable_mosaic.version = 11 : i64} {
  func.func @_vdrop_kernel(%arg0: i32, %arg1: i32, %arg2: memref<1xi32, #tpu.memory_space<smem>>, %arg3: memref<1x8x128xf32, #tpu.memory_space<vmem>>, %arg4: memref<1x8x128xf32, #tpu.memory_space<vmem>>) attributes {dimension_semantics = [#tpu.dimension_semantics<parallel>, #tpu.dimension_semantics<parallel>], iteration_bounds = array<i64: 4, 1>, scalar_prefetch = 1 : i64, scratch_operands = 0 : i64, tpu.core_type = #tpu.core_type<tc>, window_params = [{transform_indices = @transform_0, window_bounds = array<i64: 1, 8, 128>}, {transform_indices = @transform_1, window_bounds = array<i64: 1, 8, 128>}]} {
    %c0 = arith.constant 0 : index
    %0 = memref.load %arg2[%c0] : memref<1xi32, #tpu.memory_space<smem>>
    %1 = tpu.iota {dimensions = array<i32: 1>} : vector<1x128xi32>
    %c-1640531535_i32 = arith.constant -1640531535 : i32
    %2 = vector.broadcast %c-1640531535_i32 : i32 to vector<1x128xi32>
    %3 = arith.muli %1, %2 : vector<1x128xi32>
    %c-2048144777_i32 = arith.constant -2048144777 : i32
    %4 = arith.muli %0, %c-2048144777_i32 : i32
    %5 = vector.broadcast %4 : i32 to vector<1x128xi32>
    %6 = arith.addi %3, %5 : vector<1x128xi32>
    %c-1028477379_i32 = arith.constant -1028477379 : i32
    %7 = arith.muli %arg0, %c-1028477379_i32 : i32
    %8 = vector.broadcast %7 : i32 to vector<1x128xi32>
    %9 = arith.addi %6, %8 : vector<1x128xi32>
    %c16_i32 = arith.constant 16 : i32
    %10 = vector.broadcast %c16_i32 : i32 to vector<1x128xi32>
    %11 = arith.shrui %9, %10 : vector<1x128xi32>
    %12 = arith.xori %9, %11 : vector<1x128xi32>
    %c2146121005_i32 = arith.constant 2146121005 : i32
    %13 = vector.broadcast %c2146121005_i32 : i32 to vector<1x128xi32>
    %14 = arith.muli %12, %13 : vector<1x128xi32>
    %c15_i32 = arith.constant 15 : i32
    %15 = vector.broadcast %c15_i32 : i32 to vector<1x128xi32>
    %16 = arith.shrui %14, %15 : vector<1x128xi32>
    %17 = arith.xori %14, %16 : vector<1x128xi32>
    %c-2073254261_i32 = arith.constant -2073254261 : i32
    %18 = vector.broadcast %c-2073254261_i32 : i32 to vector<1x128xi32>
    %19 = arith.muli %17, %18 : vector<1x128xi32>
    %c16_i32_0 = arith.constant 16 : i32
    %20 = vector.broadcast %c16_i32_0 : i32 to vector<1x128xi32>
    %21 = arith.shrui %19, %20 : vector<1x128xi32>
    %22 = arith.xori %19, %21 : vector<1x128xi32>
    %c16_i32_1 = arith.constant 16 : i32
    %23 = vector.broadcast %c16_i32_1 : i32 to vector<1x128xi32>
    %24 = arith.shrui %22, %23 : vector<1x128xi32>
    %25 = arith.xori %22, %24 : vector<1x128xi32>
    %c2146121005_i32_2 = arith.constant 2146121005 : i32
    %26 = vector.broadcast %c2146121005_i32_2 : i32 to vector<1x128xi32>
    %27 = arith.muli %25, %26 : vector<1x128xi32>
    %c15_i32_3 = arith.constant 15 : i32
    %28 = vector.broadcast %c15_i32_3 : i32 to vector<1x128xi32>
    %29 = arith.shrui %27, %28 : vector<1x128xi32>
    %30 = arith.xori %27, %29 : vector<1x128xi32>
    %c-2073254261_i32_4 = arith.constant -2073254261 : i32
    %31 = vector.broadcast %c-2073254261_i32_4 : i32 to vector<1x128xi32>
    %32 = arith.muli %30, %31 : vector<1x128xi32>
    %c16_i32_5 = arith.constant 16 : i32
    %33 = vector.broadcast %c16_i32_5 : i32 to vector<1x128xi32>
    %34 = arith.shrui %32, %33 : vector<1x128xi32>
    %35 = arith.xori %32, %34 : vector<1x128xi32>
    %c8_i32 = arith.constant 8 : i32
    %36 = vector.broadcast %c8_i32 : i32 to vector<1x128xi32>
    %37 = arith.shrui %35, %36 : vector<1x128xi32>
    %c11744051_i32 = arith.constant 11744051 : i32
    %38 = vector.broadcast %c11744051_i32 : i32 to vector<1x128xi32>
    %39 = arith.cmpi slt, %37, %38 : vector<1x128xi32>
    %cst = arith.constant 1.42857146 : f32
    %cst_6 = arith.constant 0.000000e+00 : f32
    %40 = vector.broadcast %cst : f32 to vector<1x128xf32>
    %41 = vector.broadcast %cst_6 : f32 to vector<1x128xf32>
    %42 = arith.select %39, %40, %41 : vector<1x128xi1>, vector<1x128xf32>
    %c0_7 = arith.constant 0 : index
    %c0_8 = arith.constant 0 : index
    %c0_9 = arith.constant 0 : index
    %43 = vector.load %arg3[%c0_7, %c0_8, %c0_9] : memref<1x8x128xf32, #tpu.memory_space<vmem>>, vector<1x8x128xf32>
    %44 = vector.shape_cast %43 : vector<1x8x128xf32> to vector<8x128xf32>
    %45 = vector.broadcast %42 : vector<1x128xf32> to vector<8x128xf32>
    %46 = arith.mulf %44, %45 : vector<8x128xf32>
    %c0_10 = arith.constant 0 : index
    %c0_11 = arith.constant 0 : index
    %c0_12 = arith.constant 0 : index
    %47 = vector.load %arg4[%c0_10, %c0_11, %c0_12] : memref<1x8x128xf32, #tpu.memory_space<vmem>>, vector<1x8x128xf32>
    %48 = vector.shape_cast %47 : vector<1x8x128xf32> to vector<8x128xf32>
    %49 = vector.shape_cast %46 : vector<8x128xf32> to vector<1x8x128xf32>
    tpu.vector_store %arg4[%c0_10, %c0_11, %c0_12], %49 {strides = array<i32>} : memref<1x8x128xf32, #tpu.memory_space<vmem>>, vector<1x8x128xf32>,
    return
  }
  func.func @transform_0(%arg0: i32, %arg1: i32, %arg2: memref<1xi32, #tpu.memory_space<smem>>) -> (i32, i32, i32) {
    %c0_i32 = arith.constant 0 : i32
    %c0_i32_0 = arith.constant 0 : i32
    return %arg0, %arg1, %c0_i32 : i32, i32, i32
  }
  func.func @transform_1(%arg0: i32, %arg1: i32, %arg2: memref<1xi32, #tpu.memory_space<smem>>) -> (i32, i32, i32) {
    %c0_i32 = arith.constant 0 : i32
    %c0_i32_0 = arith.constant 0 : i32
    return %arg0, %arg1, %c0_i32 : i32, i32, i32
  }
}

</mosaic_0001>

<llo_original>
// kernel: tpu_custom_call.1
$region0: #{tpu_custom_call.1}
  #allocation0 [shape = 'u32[]', space=smem, size = 0x4, offset = 0x4, fixed_abs, tag = 'smem constant byte address 0x4 - core index']
  #allocation1 [shape = 'u32[144,128]{1,0:T(1,128)}', space=vmem, size = 0x12000, scoped, tag = 'internal scratch']
  #allocation2 [shape = 's32[1]{0}', space=sflag, size = 0x4, scoped, tag = 'scoped memory for tpu_custom_call.1']
  #allocation3 [shape = 's32[1]{0:T(128)S(6)}', space=smem, size = 0x200, scoped, tag = 'prefetched SMEM operand 0']
  %s0 = inlined_call_operand.<no memory space> [shape: s32[1], index: 0, kind: input, shape index: {}]
  %s1 = inlined_call_operand.hbm [shape: f32[4,8,128], index: 1, kind: input, shape index: {}]
  %s2 = inlined_call_operand.hbm [shape: f32[4,8,128], index: 2, kind: output, shape index: {}]
  %s3 = sld [smem:[#allocation0]]
  $region41: #{tpu_custom_call.1} parent=0
    _
  %s5 = ssub.s32 1, %s3
  %s6 = scalar_select 0, %s5, %s3
  %7 = sst [smem:[#allocation3]] %s0
  $region1: #{tpu_custom_call.1} parent=0
    #allocation4 [shape = 'u8[8192]{0}', space=vmem, size = 0x2000, scoped, tag = 'input window, operand 1']
    #allocation5 [shape = 's32[2]{0}', space=sflag, size = 0x8, scoped, tag = 'scoped memory for tpu_custom_call.1']
    #allocation6 [shape = 's32[2]{0}', space=sflag, size = 0x8, scoped, tag = 'scoped memory for tpu_custom_call.1']
    #allocation7 [shape = 'u8[8192]{0}', space=vmem, size = 0x2000, scoped, tag = 'output window, operand 0']
    %8 = vsyncpa [#allocation5], 0
    %s9 = scalar_lea.sflag [#allocation5], 1
    %10 = vsyncpa %s9, 0
    %11 = vsyncpa [#allocation6], 0
    %s12 = scalar_lea.sflag [#allocation6], 1
    %13 = vsyncpa %s12, 0
    loop: start=0, step=1, limit=6
    $region2: #{tpu_custom_call.1} parent=1 // loop_pre_header
      _
    $region3: #{tpu_custom_call.1} parent=1 // loop_header
      %s15 = sphi 0, %s19
      %p16 = scmp.ge.s32.totalorder %s15, 6
      %s22 = sphi 0, %s34
      %s23 = sphi 0, %s30
      %s24 = sphi 0, %s22
      %s25 = sphi 0, %s23
      %s26 = sphi 0, %s24
      %s27 = sphi 0, %s25
      %s39 = sphi 0, %s41
      %s42 = sphi 0, %s39
      %s43 = sphi 0, %s42
      %s59 = sphi 0, %s43
      %s67 = sphi 0, %s69
      %s70 = sphi 0, %s67
      %s71 = sphi 0, %s70
      %s87 = sphi 0, %s71
    $region4: #{tpu_custom_call.1} parent=1 // loop_header_branch
      %18 = sbr.rel (%p16) target = $region8
    $region5: #{tpu_custom_call.1} parent=1 // loop_body
      %s20 = ssub.s32 %s15, 1
      %s21 = ssub.s32 %s15, 2
      %s28 = sadd.s32 1, %s23
      %p29 = scmp.ge.s32.totalorder %s28, 1
      %s30 = scalar_select %p29, 0, %s28
      %s31 = sadd.s32 1, %s22
      %s32 = scalar_select %p29, %s31, %s22
      %p33 = scmp.ge.s32.totalorder %s32, 4
      %s34 = scalar_select %p33, 0, %s32
      %s35 = ssub.s32 %s22, %s34
      %s36 = ssub.s32 %s23, %s30
      %s37 = sor.u32 %s35, %s36
      %p38 = scmp.eq.s32.totalorder %s37, 0
      %s40 = sadd.s32 %s39, 1
      %s41 = scalar_select %p38, %s39, %s40
      %p44 = pneg %p38
      %p45 = scmp.eq.s32.totalorder %s15, 3
      %p46 = por %p44, %p45
      %p47 = scmp.ne.s32.totalorder %s39, %s42
      %p48 = scmp.eq.s32.totalorder %s15, 0
      %p49 = por %p47, %p48
      %p50 = scmp.ne.s32.totalorder %s39, %s42
      %p51 = scmp.eq.s32.totalorder %s20, 3
      %p52 = por %p50, %p51
      %p53 = scmp.ne.s32.totalorder %s42, %s43
      %p54 = scmp.eq.s32.totalorder %s20, 0
      %p55 = por %p53, %p54
      %p56 = scmp.ne.s32.totalorder %s42, %s43
      %p57 = scmp.eq.s32.totalorder %s21, 3
      %p58 = por %p56, %p57
      %p60 = scmp.ne.s32.totalorder %s43, %s59
      %p61 = scmp.eq.s32.totalorder %s21, 0
      %p62 = por %p60, %p61
      %s63 = ssub.s32 %s22, %s34
      %s64 = ssub.s32 %s23, %s30
      %s65 = sor.u32 %s63, %s64
      %p66 = scmp.eq.s32.totalorder %s65, 0
      %s68 = sadd.s32 %s67, 1
      %s69 = scalar_select %p66, %s67, %s68
      %p72 = pneg %p66
      %p73 = scmp.eq.s32.totalorder %s15, 3
      %p74 = por %p72, %p73
      %p75 = scmp.ne.s32.totalorder %s67, %s70
      %p76 = scmp.eq.s32.totalorder %s15, 0
      %p77 = por %p75, %p76
      %p78 = scmp.ne.s32.totalorder %s67, %s70
      %p79 = scmp.eq.s32.totalorder %s20, 3
      %p80 = por %p78, %p79
      %p81 = scmp.ne.s32.totalorder %s70, %s71
      %p82 = scmp.eq.s32.totalorder %s20, 0
      %p83 = por %p81, %p82
      %p84 = scmp.ne.s32.totalorder %s70, %s71
      %p85 = scmp.eq.s32.totalorder %s21, 3
      %p86 = por %p84, %p85
      %p88 = scmp.ne.s32.totalorder %s71, %s87
      %p89 = scmp.eq.s32.totalorder %s21, 0
      %p90 = por %p88, %p89
      %p91 = scmp.le.s32.totalorder 1, %s15
      %p92 = scmp.lt.s32.totalorder %s15, 5
      %p93 = pnand %p91, %p92
      %p94 = pneg %p93
      // Predicated region
      $region9: #{tpu_custom_call.1} parent=5 // pred_check
        _
      $region10: #{tpu_custom_call.1} parent=5 // pred_check_branch
        %96 = sbr.rel (%p93) target = $region12
      $region11: #{tpu_custom_call.1} parent=5 // pred_region
        %s97 = ssub.s32 %s15, 1
      $region12: #{tpu_custom_call.1} parent=5 // pred_fallthru
        _
      %p98 = scmp.lt.s32.totalorder %s15, 4
      // Predicated region
      $region13: #{tpu_custom_call.1} parent=5 // pred_check
        %p99 = pneg %p98
      $region14: #{tpu_custom_call.1} parent=5 // pred_check_branch
        %101 = sbr.rel (%p99) target = $region16
      $region15: #{tpu_custom_call.1} parent=5 // pred_region
        // Predicated region
        $region17: #{tpu_custom_call.1} parent=15 // pred_check
          %p102 = pneg %p49
        $region18: #{tpu_custom_call.1} parent=15 // pred_check_branch
          %104 = sbr.rel (%p102) target = $region20
        $region19: #{tpu_custom_call.1} parent=15 // pred_region
          %s105 = sand.u32 %s39, 1
          %s106 = scalar_lea.sflag [#allocation5], %s105
          %s107 = sand.u32 %s39, 1
          %s108 = smul.addr %s107, 8
          %s109 = scalar_lea.vmem [#allocation4], %s108
          %s111 = ssub.s32 128, 128
          %112 = vsyncadd %s106, %s111
          %s113 = sadd.s32 %s23, %s22
          %s114 = smul.addr %s113, 128
          %s115 = scalar_lea.hbm %s1, %s114
          %s117 = sshll.u32 %s109, 4
          %s118 = int_to_ptr.vmem [resolvable:$true] %s117
          %120 = dma.hbm_to_vmem [thread:$0]  %s115, 128, %s118, %s106
        $region20: #{tpu_custom_call.1} parent=15 // pred_fallthru
          _
      $region16: #{tpu_custom_call.1} parent=5 // pred_fallthru
        _
      %p121 = scmp.le.s32.totalorder 1, %s15
      %p122 = scmp.lt.s32.totalorder %s15, 5
      %p123 = pnand %p121, %p122
      %p124 = pneg %p123
      // Predicated region
      $region21: #{tpu_custom_call.1} parent=5 // pred_check
        _
      $region22: #{tpu_custom_call.1} parent=5 // pred_check_branch
        %126 = sbr.rel (%p123) target = $region24
      $region23: #{tpu_custom_call.1} parent=5 // pred_region
        %s127 = ssub.s32 %s15, 1
        %s128 = sand.u32 %s42, 1
        %s129 = scalar_lea.sflag [#allocation5], %s128
        %s130 = sand.u32 %s42, 1
        %s131 = smul.addr %s130, 8
        %s132 = scalar_lea.vmem [#allocation4], %s131
        // Predicated region
        $region25: #{tpu_custom_call.1} parent=23 // pred_check
          %p133 = pneg %p55
        $region26: #{tpu_custom_call.1} parent=23 // pred_check_branch
          %135 = sbr.rel (%p133) target = $region28
        $region27: #{tpu_custom_call.1} parent=23 // pred_region
          %136 = dma.done %s129, 128
        $region28: #{tpu_custom_call.1} parent=23 // pred_fallthru
          _
        %s137 = sand.u32 %s42, 1
        %s138 = scalar_lea.sflag [#allocation5], %s137
        %s139 = sand.u32 %s42, 1
        %s140 = smul.addr %s139, 8
        %s141 = scalar_lea.vmem [#allocation4], %s140
        %p142 = pneg %p55
        %p143 = pneg %p52
        %p144 = pneg %p83
        %p145 = pneg %p80
        %s146 = sand.u32 %s70, 1
        %s147 = scalar_lea.sflag [#allocation6], %s146
        %s148 = sand.u32 %s70, 1
        %s149 = smul.addr %s148, 8
        %s150 = scalar_lea.vmem [#allocation7], %s149
        %s151 = sld [smem:[#allocation3]]
        %v152 = vlaneseq
        %v153 = vand.u32 %v152, 127
        %v154 = vmul.u32 %v153, 2654435761
        %s155 = smul.u32 %s151, 2246822519
        %v156 = vstv %s155
        %v157 = vadd.s32 %v154, %v156
        %s158 = smul.u32 %s24, 3266489917
        %v159 = vstv %s158
        %v160 = vadd.s32 %v157, %v159
        %v161 = vshrl.u32 %v160, 16
        %v162 = vxor.u32 %v160, %v161
        %v163 = vmul.u32 %v162, 2146121005
        %v164 = vshrl.u32 %v163, 15
        %v165 = vxor.u32 %v163, %v164
        %v166 = vmul.u32 %v165, 2221713035
        %v167 = vshrl.u32 %v166, 16
        %v168 = vxor.u32 %v166, %v167
        %v169 = vshrl.u32 %v168, 16
        %v170 = vxor.u32 %v168, %v169
        %v171 = vmul.u32 %v170, 2146121005
        %v172 = vshrl.u32 %v171, 15
        %v173 = vxor.u32 %v171, %v172
        %v174 = vmul.u32 %v173, 2221713035
        %v175 = vshrl.u32 %v174, 16
        %v176 = vxor.u32 %v174, %v175
        %v177 = vshrl.u32 %v176, 8
        %vm178 = vcmp.lt.s32.totalorder %v177, 11744051
        %v179 = vsel %vm178, 1.4285715, 0.0
        %v180 = vld [vmem:[%s132] sm:$0xff]
        %v181 = vmul.f32 %v180, %v179
        %182 = vst [vmem:[%s150] sm:$0xff] %v181
        %s183 = sand.u32 %s70, 1
        %s184 = scalar_lea.sflag [#allocation6], %s183
        %s185 = sand.u32 %s70, 1
        %s186 = smul.addr %s185, 8
        %s187 = scalar_lea.vmem [#allocation7], %s186
        // Predicated region
        $region29: #{tpu_custom_call.1} parent=23 // pred_check
          %p188 = pneg %p80
        $region30: #{tpu_custom_call.1} parent=23 // pred_check_branch
          %190 = sbr.rel (%p188) target = $region32
        $region31: #{tpu_custom_call.1} parent=23 // pred_region
          %s192 = ssub.s32 128, 128
          %193 = vsyncadd %s184, %s192
          %s194 = sadd.s32 %s25, %s24
          %s195 = smul.addr %s194, 128
          %s196 = scalar_lea.hbm %s2, %s195
          %s198 = sshll.u32 %s187, 4
          %s199 = int_to_ptr.vmem [resolvable:$true] %s198
          %201 = dma.vmem_to_hbm [thread:$0]  %s199, 128, %s196, %s184
        $region32: #{tpu_custom_call.1} parent=23 // pred_fallthru
          _
      $region24: #{tpu_custom_call.1} parent=5 // pred_fallthru
        _
      %p202 = scmp.le.s32.totalorder 2, %s15
      // Predicated region
      $region33: #{tpu_custom_call.1} parent=5 // pred_check
        %p203 = pneg %p202
      $region34: #{tpu_custom_call.1} parent=5 // pred_check_branch
        %205 = sbr.rel (%p203) target = $region36
      $region35: #{tpu_custom_call.1} parent=5 // pred_region
        %s206 = ssub.s32 %s15, 2
        // Predicated region
        $region37: #{tpu_custom_call.1} parent=35 // pred_check
          %p207 = pneg %p86
        $region38: #{tpu_custom_call.1} parent=35 // pred_check_branch
          %209 = sbr.rel (%p207) target = $region40
        $region39: #{tpu_custom_call.1} parent=35 // pred_region
          %s210 = sand.u32 %s71, 1
          %s211 = scalar_lea.sflag [#allocation6], %s210
          %s212 = sand.u32 %s71, 1
          %s213 = smul.addr %s212, 8
          %s214 = scalar_lea.vmem [#allocation7], %s213
          %215 = dma.done %s211, 128
        $region40: #{tpu_custom_call.1} parent=35 // pred_fallthru
          _
      $region36: #{tpu_custom_call.1} parent=5 // pred_fallthru
        _
    $region6: #{tpu_custom_call.1} parent=1 // loop_footer
      %s19 = sadd.s32 1, %s15
    $region7: #{tpu_custom_call.1} parent=1 // loop_footer_branch
      %14 = sbr.rel target = $region3
    $region8: #{tpu_custom_call.1} parent=1 // loop_exit
      _
    %216 = vsyncpa [#allocation5], 1
    %s217 = scalar_lea.sflag [#allocation5], 1
    %218 = vsyncpa %s217, 1
    %219 = vsyncpa [#allocation6], 1
    %s220 = scalar_lea.sflag [#allocation6], 1
    %221 = vsyncpa %s220, 1

</llo_original>
